<compile_context>
chip_gen: v5e
topology: v5e:2x2
jax: 0.10.0
libtpu: 0.0.40
codegen_flags: <defaults>
</compile_context>

<pallas_src>
import jax
import jax.numpy as jnp
from jax.experimental import pallas as pl
from jax.experimental.pallas import tpu as pltpu

# ---- small config consistent with ASTConfig fields used by the module ----
NUM_MEL_BINS = 16
MAX_LENGTH   = 16
PATCH_SIZE   = 4
FREQ_STRIDE  = 4
TIME_STRIDE  = 4
HIDDEN_SIZE  = 32
BATCH        = 2

F_OUT = (NUM_MEL_BINS - PATCH_SIZE) // FREQ_STRIDE + 1
T_OUT = (MAX_LENGTH - PATCH_SIZE) // TIME_STRIDE + 1
NUM_PATCHES = F_OUT * T_OUT
SEQ = NUM_PATCHES + 2          # +2 for cls + distillation tokens
K = PATCH_SIZE * PATCH_SIZE    # flattened conv kernel (in_channels = 1)

LANE = 128
SUBLANE = 8
H_PAD   = ((HIDDEN_SIZE + LANE - 1) // LANE) * LANE       # lane-dense hidden width
K_PAD   = ((K + LANE - 1) // LANE) * LANE                 # lane-dense contraction dim
SEQ_PAD = ((SEQ + SUBLANE - 1) // SUBLANE) * SUBLANE      # sublane-dense sequence


def ast_embeddings_kernel(patches_ref, w_ref, pos_ref, out_ref):
    # patches_ref: (Bt, SEQ_PAD, K_PAD) — rows 0..1 (cls/dist slots) and rows
    #              >= SEQ are zero; real patches live in rows 2..SEQ-1, cols :K.
    # w_ref:       (K_PAD, H_PAD)       — flattened Conv2d weight, zero-padded.
    # pos_ref:     (SEQ_PAD, H_PAD)     — pos-emb with cls/dist folded into
    #              rows 0/1 and the conv bias folded into rows 2..SEQ-1.
    # out_ref:     (Bt, SEQ_PAD, H_PAD)
    bt = patches_ref.shape[0]
    w = w_ref[...]
    pos = pos_ref[...]
    # Statically unrolled over the (small) per-tile batch: each iteration is a
    # plain 2-D MXU matmul and ONE full, lane/sublane-dense (SEQ_PAD, H_PAD)
    # store.  No in-kernel reshape (no VMEM relayout), no masked vst.
    for b in range(bt):
        proj = jnp.dot(patches_ref[b], w, preferred_element_type=jnp.float32)
        out_ref[b] = (proj + pos).astype(out_ref.dtype)


def _im2col(input_values):
    """input_values: (B, max_length, num_mel_bins) -> patches (B, N, P*P).

    Matches PyTorch: x.unsqueeze(1).transpose(2, 3) gives image
    img[b, 0, mel, time] = input_values[b, time, mel]; conv flattens output as
    f * T_OUT + t, and kernel index k = i * P + j over (mel, time) offsets.

    NOTE: at production AST sizes fuse this gather into the kernel instead of
    round-tripping the patches through HBM (dominant extra HBM cost on v5e).
    """
    img = jnp.transpose(input_values, (0, 2, 1))  # (B, mel, time)
    i_idx = (jnp.arange(F_OUT) * FREQ_STRIDE)[:, None] + jnp.arange(PATCH_SIZE)[None, :]
    j_idx = (jnp.arange(T_OUT) * TIME_STRIDE)[:, None] + jnp.arange(PATCH_SIZE)[None, :]
    patches = img[:, i_idx[:, None, :, None], j_idx[None, :, None, :]]  # (B, F, T, P, P)
    return patches.reshape(input_values.shape[0], NUM_PATCHES, K)


def ast_embeddings(input_values, conv_w, conv_b, cls_token, dist_token, pos_emb):
    """Forward pass of ASTEmbeddings.

    input_values: (B, MAX_LENGTH, NUM_MEL_BINS) float32
    conv_w:       (HIDDEN_SIZE, 1, P, P)  (PyTorch OIHW)
    conv_b:       (HIDDEN_SIZE,)
    cls_token / dist_token: (1, 1, HIDDEN_SIZE)
    pos_emb:      (1, SEQ, HIDDEN_SIZE)
    returns:      (B, SEQ, HIDDEN_SIZE)
    """
    B = input_values.shape[0]
    patches = _im2col(input_values.astype(jnp.float32))                 # (B, N, K)

    # Augmented, fully padded patch tensor: rows 0-1 (cls/dist slots) and rows
    # >= SEQ are exactly zero, so the matmul contributes nothing there; K is
    # zero-padded to a lane-dense 128 (zero columns are free on the MXU).
    patches_aug = jnp.zeros((B, SEQ_PAD, K_PAD), jnp.float32)
    patches_aug = patches_aug.at[:, 2:2 + NUM_PATCHES, :K].set(patches)

    # Flattened Conv2d weight, zero-padded to (K_PAD, H_PAD).
    w_flat = conv_w.reshape(HIDDEN_SIZE, K).T.astype(jnp.float32)       # (K, H)
    w_pad = jnp.zeros((K_PAD, H_PAD), jnp.float32).at[:K, :HIDDEN_SIZE].set(w_flat)

    # Fold cls token, distillation token and conv bias into the position
    # embedding table (done once in the wrapper); pad to (SEQ_PAD, H_PAD).
    pos = pos_emb.reshape(SEQ, HIDDEN_SIZE).astype(jnp.float32)
    pos = pos.at[0, :].add(cls_token.reshape(HIDDEN_SIZE).astype(jnp.float32))
    pos = pos.at[1, :].add(dist_token.reshape(HIDDEN_SIZE).astype(jnp.float32))
    pos = pos.at[2:, :].add(conv_b.reshape(1, HIDDEN_SIZE).astype(jnp.float32))
    pos_pad = jnp.zeros((SEQ_PAD, H_PAD), jnp.float32).at[:SEQ, :HIDDEN_SIZE].set(pos)

    # Single grid step at these shapes: v5e/v6e are single-TC, so extra grid
    # steps only add ~0.35 us per-step overhead.  For v7x at production sizes,
    # use num_tiles >= 2 ("parallel"), VMEM-size bt for 64 MiB, set
    # vmem_limit_bytes, and mark the constant-index weight/pos BlockSpecs with
    # pipeline_mode=pl.Buffered(1) to avoid a wasted second buffer.
    num_tiles = 1
    bt = B

    grid_spec = pltpu.PrefetchScalarGridSpec(
        num_scalar_prefetch=0,
        grid=(num_tiles,),
        in_specs=[
            pl.BlockSpec((bt, SEQ_PAD, K_PAD), lambda i: (i, 0, 0)),   # patches (per-tile)
            pl.BlockSpec((K_PAD, H_PAD),       lambda i: (0, 0)),      # weight
            pl.BlockSpec((SEQ_PAD, H_PAD),     lambda i: (0, 0)),      # pos (+cls/dist/bias)
        ],
        out_specs=pl.BlockSpec((bt, SEQ_PAD, H_PAD), lambda i: (i, 0, 0)),
    )

    out_pad = pl.pallas_call(
        ast_embeddings_kernel,
        out_shape=jax.ShapeDtypeStruct((num_tiles * bt, SEQ_PAD, H_PAD), jnp.float32),
        grid_spec=grid_spec,
        compiler_params=pltpu.CompilerParams(dimension_semantics=("parallel",)),
    )(patches_aug, w_pad, pos_pad)

    # Strip sequence / lane padding outside the kernel.
    return out_pad[:B, :SEQ, :HIDDEN_SIZE]


def _reference(input_values, conv_w, conv_b, cls_token, dist_token, pos_emb):
    # Independent plain-JAX reference mirroring the PyTorch forward.
    img = jnp.transpose(input_values, (0, 2, 1))[:, None]  # (B, 1, mel, time) NCHW
    conv = jax.lax.conv_general_dilated(
        img, conv_w, window_strides=(FREQ_STRIDE, TIME_STRIDE), padding="VALID",
        dimension_numbers=("NCHW", "OIHW", "NCHW"))
    conv = conv + conv_b[None, :, None, None]
    B = input_values.shape[0]
    patch_emb = conv.reshape(B, HIDDEN_SIZE, NUM_PATCHES).transpose(0, 2, 1)
    cls = jnp.broadcast_to(cls_token, (B, 1, HIDDEN_SIZE))
    dist = jnp.broadcast_to(dist_token, (B, 1, HIDDEN_SIZE))
    return jnp.concatenate([cls, dist, patch_emb], axis=1) + pos_emb


if __name__ == "__main__":
    key = jax.random.PRNGKey(0)
    k_in, k_w, k_b, k_cls, k_dist, k_pos = jax.random.split(key, 6)

    input_values = jax.random.normal(k_in, (BATCH, MAX_LENGTH, NUM_MEL_BINS), jnp.float32)

    # Deterministic synthetic parameters (same shapes as the PyTorch module).
    conv_w = jax.random.normal(k_w, (HIDDEN_SIZE, 1, PATCH_SIZE, PATCH_SIZE), jnp.float32) * 0.05
    conv_b = jax.random.normal(k_b, (HIDDEN_SIZE,), jnp.float32) * 0.05
    cls_token = jax.random.normal(k_cls, (1, 1, HIDDEN_SIZE), jnp.float32) * 0.02
    dist_token = jax.random.normal(k_dist, (1, 1, HIDDEN_SIZE), jnp.float32) * 0.02
    pos_emb = jax.random.normal(k_pos, (1, SEQ, HIDDEN_SIZE), jnp.float32) * 0.02

    out = ast_embeddings(input_values, conv_w, conv_b, cls_token, dist_token, pos_emb)
    out = jax.block_until_ready(out)

    ref = _reference(input_values, conv_w, conv_b, cls_token, dist_token, pos_emb)
    assert out.shape == (BATCH, SEQ, HIDDEN_SIZE)
    assert jnp.allclose(out, ref, atol=1e-4, rtol=1e-4)

    print("KERNEL_OK")
</pallas_src>

<mosaic_0001>
module attributes {stable_mosaic.version = 11 : i64} {
  func.func @ast_embeddings_kernel(%arg0: i32, %arg1: memref<2x24x128xf32, #tpu.memory_space<vmem>>, %arg2: memref<128x128xf32, #tpu.memory_space<vmem>>, %arg3: memref<24x128xf32, #tpu.memory_space<vmem>>, %arg4: memref<2x24x128xf32, #tpu.memory_space<vmem>>) attributes {dimension_semantics = [#tpu.dimension_semantics<parallel>], iteration_bounds = array<i64: 1>, scalar_prefetch = 0 : i64, scratch_operands = 0 : i64, tpu.core_type = #tpu.core_type<tc>, window_params = [{transform_indices = @transform_0, window_bounds = array<i64: 2, 24, 128>}, {pipeline_mode = #tpu.pipeline_mode<synchronous>, transform_indices = @transform_1, window_bounds = array<i64: 128, 128>}, {pipeline_mode = #tpu.pipeline_mode<synchronous>, transform_indices = @transform_2, window_bounds = array<i64: 24, 128>}, {transform_indices = @transform_3, window_bounds = array<i64: 2, 24, 128>}]} {
    %c0 = arith.constant 0 : index
    %c0_0 = arith.constant 0 : index
    %0 = vector.load %arg2[%c0, %c0_0] : memref<128x128xf32, #tpu.memory_space<vmem>>, vector<128x128xf32>
    %c0_1 = arith.constant 0 : index
    %c0_2 = arith.constant 0 : index
    %1 = vector.load %arg3[%c0_1, %c0_2] : memref<24x128xf32, #tpu.memory_space<vmem>>, vector<24x128xf32>
    %c0_3 = arith.constant 0 : index
    %c0_4 = arith.constant 0 : index
    %c0_5 = arith.constant 0 : index
    %2 = vector.load %arg1[%c0_3, %c0_4, %c0_5] : memref<2x24x128xf32, #tpu.memory_space<vmem>>, vector<1x24x128xf32>
    %3 = vector.shape_cast %2 : vector<1x24x128xf32> to vector<24x128xf32>
    %cst = arith.constant dense<0.000000e+00> : vector<24x128xf32>
    %4 = tpu.matmul %3, %0, %cst {dimension_numbers = #tpu.dot_dimension_numbers<[1], [0], [0], [1], [0, 0, 1, 1], [], []>} : vector<24x128xf32>, vector<128x128xf32>, vector<24x128xf32> -> vector<24x128xf32>
    %5 = arith.addf %4, %1 : vector<24x128xf32>
    %c0_6 = arith.constant 0 : index
    %c0_7 = arith.constant 0 : index
    %c0_8 = arith.constant 0 : index
    %6 = vector.load %arg4[%c0_6, %c0_7, %c0_8] : memref<2x24x128xf32, #tpu.memory_space<vmem>>, vector<1x24x128xf32>
    %7 = vector.shape_cast %6 : vector<1x24x128xf32> to vector<24x128xf32>
    %8 = vector.shape_cast %5 : vector<24x128xf32> to vector<1x24x128xf32>
    tpu.vector_store %arg4[%c0_6, %c0_7, %c0_8], %8 {strides = array<i32>} : memref<2x24x128xf32, #tpu.memory_space<vmem>>, vector<1x24x128xf32>,
    %c1 = arith.constant 1 : index
    %c0_9 = arith.constant 0 : index
    %c0_10 = arith.constant 0 : index
    %9 = vector.load %arg1[%c1, %c0_9, %c0_10] : memref<2x24x128xf32, #tpu.memory_space<vmem>>, vector<1x24x128xf32>
    %10 = vector.shape_cast %9 : vector<1x24x128xf32> to vector<24x128xf32>
    %cst_11 = arith.constant dense<0.000000e+00> : vector<24x128xf32>
    %11 = tpu.matmul %10, %0, %cst_11 {dimension_numbers = #tpu.dot_dimension_numbers<[1], [0], [0], [1], [0, 0, 1, 1], [], []>} : vector<24x128xf32>, vector<128x128xf32>, vector<24x128xf32> -> vector<24x128xf32>
    %12 = arith.addf %11, %1 : vector<24x128xf32>
    %c1_12 = arith.constant 1 : index
    %c0_13 = arith.constant 0 : index
    %c0_14 = arith.constant 0 : index
    %13 = vector.load %arg4[%c1_12, %c0_13, %c0_14] : memref<2x24x128xf32, #tpu.memory_space<vmem>>, vector<1x24x128xf32>
    %14 = vector.shape_cast %13 : vector<1x24x128xf32> to vector<24x128xf32>
    %15 = vector.shape_cast %12 : vector<24x128xf32> to vector<1x24x128xf32>
    tpu.vector_store %arg4[%c1_12, %c0_13, %c0_14], %15 {strides = array<i32>} : memref<2x24x128xf32, #tpu.memory_space<vmem>>, vector<1x24x128xf32>,
    return
  }
  func.func @transform_0(%arg0: i32) -> (i32, i32, i32) {
    %c0_i32 = arith.constant 0 : i32
    %c0_i32_0 = arith.constant 0 : i32
    %c0_i32_1 = arith.constant 0 : i32
    return %arg0, %c0_i32, %c0_i32_0 : i32, i32, i32
  }
  func.func @transform_1(%arg0: i32) -> (i32, i32) {
    %c0_i32 = arith.constant 0 : i32
    %c0_i32_0 = arith.constant 0 : i32
    %c0_i32_1 = arith.constant 0 : i32
    return %c0_i32, %c0_i32_0 : i32, i32
  }
  func.func @transform_2(%arg0: i32) -> (i32, i32) {
    %c0_i32 = arith.constant 0 : i32
    %c0_i32_0 = arith.constant 0 : i32
    %c0_i32_1 = arith.constant 0 : i32
    return %c0_i32, %c0_i32_0 : i32, i32
  }
  func.func @transform_3(%arg0: i32) -> (i32, i32, i32) {
    %c0_i32 = arith.constant 0 : i32
    %c0_i32_0 = arith.constant 0 : i32
    %c0_i32_1 = arith.constant 0 : i32
    return %arg0, %c0_i32, %c0_i32_0 : i32, i32, i32
  }
}

</mosaic_0001>

<llo_original>
// kernel: tpu_custom_call.1
$region0: #{tpu_custom_call.1}
  #allocation0 [shape = 'u32[]', space=smem, size = 0x4, offset = 0x4, fixed_abs, tag = 'smem constant byte address 0x4 - core index']
  #allocation1 [shape = 'u32[72,128]{1,0:T(1,128)}', space=vmem, size = 0x9000, scoped, tag = 'internal scratch']
  %s0 = inlined_call_operand.hbm [shape: f32[2,24,128], index: 0, kind: input, shape index: {}]
  %s1 = inlined_call_operand.hbm [shape: f32[128,128], index: 1, kind: input, shape index: {}]
  %s2 = inlined_call_operand.hbm [shape: f32[24,128], index: 2, kind: input, shape index: {}]
  %s3 = inlined_call_operand.hbm [shape: f32[2,24,128], index: 3, kind: output, shape index: {}]
  %s4 = sld [smem:[#allocation0]]
  $region34: #{tpu_custom_call.1} parent=0
    _
  %s6 = ssub.s32 1, %s4
  %s7 = scalar_select 0, %s6, %s4
  $region1: #{tpu_custom_call.1} parent=0
    #allocation2 [shape = 'u8[24576]{0}', space=vmem, size = 0x6000, scoped, tag = 'input window, operand 0, single buffered']
    #allocation3 [shape = 's32[1]{0}', space=sflag, size = 0x4, scoped, tag = 'scoped memory for tpu_custom_call.1']
    #allocation4 [shape = 's32[1]{0}', space=sflag, size = 0x4, scoped, tag = 'scoped memory for tpu_custom_call.1']
    #allocation5 [shape = 'u8[65536]{0}', space=vmem, size = 0x10000, scoped, tag = 'input window, operand 1, single buffered']
    #allocation6 [shape = 's32[1]{0}', space=sflag, size = 0x4, scoped, tag = 'scoped memory for tpu_custom_call.1']
    #allocation7 [shape = 'u8[12288]{0}', space=vmem, size = 0x3000, scoped, tag = 'input window, operand 2, single buffered']
    #allocation8 [shape = 'u8[24576]{0}', space=vmem, size = 0x6000, scoped, tag = 'output window, operand 0, single buffered']
    %8 = vsyncpa [#allocation3], 0
    %9 = vsyncpa [#allocation6], 0
    %10 = vsyncpa [#allocation4], 0
    // Predicated region
    $region2: #{tpu_custom_call.1} parent=1 // pred_check
      _
    $region3: #{tpu_custom_call.1} parent=1 // pred_check_branch
      %12 = sbr.rel (0) target = $region5
    $region4: #{tpu_custom_call.1} parent=1 // pred_region
      %14 = vsyncadd [#allocation3], 0
      %s15 = sshll.u32 %s0, 4
      %s16 = int_to_ptr.hbm [resolvable:$true] %s15
      %s17 = sshll.u32 [#allocation2], 4
      %s18 = int_to_ptr.vmem [resolvable:$true] %s17
      %23 = dma.hbm_to_vmem [thread:$0]  %s16, 768, %s18, [#allocation3], 128, 128, 8
    $region5: #{tpu_custom_call.1} parent=1 // pred_fallthru
      _
    // Predicated region
    $region6: #{tpu_custom_call.1} parent=1 // pred_check
      _
    $region7: #{tpu_custom_call.1} parent=1 // pred_check_branch
      %25 = sbr.rel (0) target = $region9
    $region8: #{tpu_custom_call.1} parent=1 // pred_region
      %27 = vsyncadd [#allocation6], 0
      %s28 = sshll.u32 %s1, 4
      %s29 = int_to_ptr.hbm [resolvable:$true] %s28
      %s30 = sshll.u32 [#allocation5], 4
      %s31 = int_to_ptr.vmem [resolvable:$true] %s30
      %36 = dma.hbm_to_vmem [thread:$0]  %s29, 2048, %s31, [#allocation6], 128, 128, 8
    $region9: #{tpu_custom_call.1} parent=1 // pred_fallthru
      _
    // Predicated region
    $region10: #{tpu_custom_call.1} parent=1 // pred_check
      _
    $region11: #{tpu_custom_call.1} parent=1 // pred_check_branch
      %38 = sbr.rel (0) target = $region13
    $region12: #{tpu_custom_call.1} parent=1 // pred_region
      %40 = vsyncadd [#allocation6], 0
      %s41 = sshll.u32 %s2, 4
      %s42 = int_to_ptr.hbm [resolvable:$true] %s41
      %s43 = sshll.u32 [#allocation7], 4
      %s44 = int_to_ptr.vmem [resolvable:$true] %s43
      %49 = dma.hbm_to_vmem [thread:$0]  %s42, 384, %s44, [#allocation6], 128, 128, 8
    $region13: #{tpu_custom_call.1} parent=1 // pred_fallthru
      _
    // Predicated region
    $region14: #{tpu_custom_call.1} parent=1 // pred_check
      _
    $region15: #{tpu_custom_call.1} parent=1 // pred_check_branch
      %51 = sbr.rel (0) target = $region17
    $region16: #{tpu_custom_call.1} parent=1 // pred_region
      %53 = dma.done [#allocation3], 768
    $region17: #{tpu_custom_call.1} parent=1 // pred_fallthru
      _
    // Predicated region
    $region18: #{tpu_custom_call.1} parent=1 // pred_check
      _
    $region19: #{tpu_custom_call.1} parent=1 // pred_check_branch
      %55 = sbr.rel (0) target = $region21
    $region20: #{tpu_custom_call.1} parent=1 // pred_region
      %57 = dma.done [#allocation6], 2048
    $region21: #{tpu_custom_call.1} parent=1 // pred_fallthru
      _
    // Predicated region
    $region22: #{tpu_custom_call.1} parent=1 // pred_check
      _
    $region23: #{tpu_custom_call.1} parent=1 // pred_check_branch
      %59 = sbr.rel (0) target = $region25
    $region24: #{tpu_custom_call.1} parent=1 // pred_region
      %61 = dma.done [#allocation6], 384
    $region25: #{tpu_custom_call.1} parent=1 // pred_fallthru
      _
    %v62 = vld [vmem:[#allocation5] sm:$0xff]
    %v63 = vld [vmem:[#allocation5 + $0x8] sm:$0xff]
    %v64 = vld [vmem:[#allocation5 + $0x10] sm:$0xff]
    %v65 = vld [vmem:[#allocation5 + $0x18] sm:$0xff]
    %v66 = vld [vmem:[#allocation5 + $0x20] sm:$0xff]
    %v67 = vld [vmem:[#allocation5 + $0x28] sm:$0xff]
    %v68 = vld [vmem:[#allocation5 + $0x30] sm:$0xff]
    %v69 = vld [vmem:[#allocation5 + $0x38] sm:$0xff]
    %v70 = vld [vmem:[#allocation5 + $0x40] sm:$0xff]
    %v71 = vld [vmem:[#allocation5 + $0x48] sm:$0xff]
    %v72 = vld [vmem:[#allocation5 + $0x50] sm:$0xff]
    %v73 = vld [vmem:[#allocation5 + $0x58] sm:$0xff]
    %v74 = vld [vmem:[#allocation5 + $0x60] sm:$0xff]
    %v75 = vld [vmem:[#allocation5 + $0x68] sm:$0xff]
    %v76 = vld [vmem:[#allocation5 + $0x70] sm:$0xff]
    %v77 = vld [vmem:[#allocation5 + $0x78] sm:$0xff]
    %v78 = vld [vmem:[#allocation7] sm:$0xff]
    %v79 = vld [vmem:[#allocation7 + $0x8] sm:$0xff]
    %v80 = vld [vmem:[#allocation7 + $0x10] sm:$0xff]
    %v81 = vld [vmem:[#allocation2] sm:$0xff]
    %v82 = vld [vmem:[#allocation2 + $0x8] sm:$0xff]
    %v83 = vld [vmem:[#allocation2 + $0x10] sm:$0xff]
    %84 = vmatpush.msra.mxu0 %v77
    %85 = vmatpush.msra.mxu0 %v76
    %86 = vmatpush.msra.mxu0 %v75
    %87 = vmatpush.msra.mxu0 %v74
    %88 = vmatpush.msra.mxu0 %v73
    %89 = vmatpush.msra.mxu0 %v72
    %90 = vmatpush.msra.mxu0 %v71
    %91 = vmatpush.msra.mxu0 %v70
    %92 = vmatpush.msra.mxu0 %v69
    %93 = vmatpush.msra.mxu0 %v68
    %94 = vmatpush.msra.mxu0 %v67
    %95 = vmatpush.msra.mxu0 %v66
    %96 = vmatpush.msra.mxu0 %v65
    %97 = vmatpush.msra.mxu0 %v64
    %98 = vmatpush.msra.mxu0 %v63
    %99 = vmatpush.msra.mxu0 %v62
    %100 = vmatmul.f32.gmra.mxu0 %v81
    %v101 = vpop.f32.mrf.mxu0
    %v102 = vadd.f32 %v78, %v101
    %103 = vmatmul.f32.gmra.mxu0 %v82
    %v104 = vpop.f32.mrf.mxu0
    %v105 = vadd.f32 %v79, %v104
    %106 = vmatmul.f32.gmra.mxu0 %v83
    %v107 = vpop.f32.mrf.mxu0
    %v108 = vadd.f32 %v80, %v107
    %109 = vdwg.mxu0
    %110 = vst [vmem:[#allocation8] sm:$0xff] %v102
    %111 = vst [vmem:[#allocation8 + $0x8] sm:$0xff] %v105
    %112 = vst [vmem:[#allocation8 + $0x10] sm:$0xff] %v108
    %s113 = scalar_lea.vmem [#allocation2], 24
    %v114 = vld [vmem:[%s113] sm:$0xff]
    %v115 = vld [vmem:[%s113 + $0x8] sm:$0xff]
    %v116 = vld [vmem:[%s113 + $0x10] sm:$0xff]
    %117 = vmatpush.msra.mxu0 %v77
    %118 = vmatpush.msra.mxu0 %v76
    %119 = vmatpush.msra.mxu0 %v75
    %120 = vmatpush.msra.mxu0 %v74
    %121 = vmatpush.msra.mxu0 %v73
    %122 = vmatpush.msra.mxu0 %v72
    %123 = vmatpush.msra.mxu0 %v71
    %124 = vmatpush.msra.mxu0 %v70
    %125 = vmatpush.msra.mxu0 %v69
    %126 = vmatpush.msra.mxu0 %v68
    %127 = vmatpush.msra.mxu0 %v67
    %128 = vmatpush.msra.mxu0 %v66
    %129 = vmatpush.msra.mxu0 %v65
    %130 = vmatpush.msra.mxu0 %v64
    %131 = vmatpush.msra.mxu0 %v63
    %132 = vmatpush.msra.mxu0 %v62
    %133 = vmatmul.f32.gmra.mxu0 %v114
    %v134 = vpop.f32.mrf.mxu0
    %v135 = vadd.f32 %v78, %v134
    %136 = vmatmul.f32.gmra.mxu0 %v115
    %v137 = vpop.f32.mrf.mxu0
    %v138 = vadd.f32 %v79, %v137
    %139 = vmatmul.f32.gmra.mxu0 %v116
    %v140 = vpop.f32.mrf.mxu0
    %v141 = vadd.f32 %v80, %v140
    %142 = vdwg.mxu0
    %s143 = scalar_lea.vmem [#allocation8], 24
    %144 = vst [vmem:[%s143] sm:$0xff] %v135
    %145 = vst [vmem:[%s143 + $0x8] sm:$0xff] %v138
    %146 = vst [vmem:[%s143 + $0x10] sm:$0xff] %v141
    // Predicated region
    $region26: #{tpu_custom_call.1} parent=1 // pred_check
      _
    $region27: #{tpu_custom_call.1} parent=1 // pred_check_branch
      %148 = sbr.rel (0) target = $region29
    $region28: #{tpu_custom_call.1} parent=1 // pred_region
      %150 = vsyncadd [#allocation4], 0
      %s151 = sshll.u32 [#allocation8], 4
      %s152 = int_to_ptr.vmem [resolvable:$true] %s151
      %s153 = sshll.u32 %s3, 4
      %s154 = int_to_ptr.hbm [resolvable:$true] %s153
      %159 = dma.vmem_to_hbm [thread:$0]  %s152, 768, %s154, [#allocation4], 128, 128, 8
    $region29: #{tpu_custom_call.1} parent=1 // pred_fallthru
      _
    // Predicated region
    $region30: #{tpu_custom_call.1} parent=1 // pred_check
      _
    $region31: #{tpu_custom_call.1} parent=1 // pred_check_branch
      %161 = sbr.rel (0) target = $region33
    $region32: #{tpu_custom_call.1} parent=1 // pred_region
      %163 = dma.done [#allocation4], 768
    $region33: #{tpu_custom_call.1} parent=1 // pred_fallthru
      _
    %164 = vsyncpa [#allocation3], 1
    %165 = vsyncpa [#allocation6], 1
    %166 = vsyncpa [#allocation4], 1

</llo_original>
